<compile_context>
chip_gen: v5e
topology: v5e:2x2
jax: 0.10.0
libtpu: 0.0.40
codegen_flags: <defaults>
</compile_context>

<pallas_src>
import functools

import jax
import jax.numpy as jnp
from jax.experimental import pallas as pl
from jax.experimental.pallas import tpu as pltpu


def _layernorm_kernel(alpha_ref, bias_ref, x_ref, o_ref, *, eps, feat):
    # x_ref: (row_tile, feat) VMEM tile; alpha/bias: (1,) f32 scalars in SMEM.
    x = x_ref[...].astype(jnp.float32)

    # Pass 1: mean.
    mean = jnp.sum(x, axis=-1, keepdims=True) * (1.0 / feat)

    # Pass 2: centered sum of squares (no cancellation); unbiased (ddof = 1).
    xc = x - mean
    var = jnp.sum(xc * xc, axis=-1, keepdims=True) * (1.0 / (feat - 1))
    std = jnp.sqrt(var)

    # Per-row (row_tile, 1) quantities; exact reciprocal keeps tight agreement
    # with the torch reference (EUP work is hidden under HBM time anyway).
    inv = pl.reciprocal(std + eps, approx=False)

    scale = alpha_ref[0] * inv            # (row_tile, 1)
    # Single fused multiply-add over the full (already centered) tile.
    o_ref[...] = (xc * scale + bias_ref[0]).astype(o_ref.dtype)


def _vmem_capacity_bytes():
    try:
        return int(pltpu.get_tpu_info().vmem_capacity_bytes)
    except Exception:
        # Conservative default (v7x-sized VMEM) if the query is unavailable.
        return 64 << 20


def _tiling_params(rows, feat, itemsize):
    """Pick (row_tile, vmem_limit_bytes) from the device's VMEM capacity."""
    vmem_cap = _vmem_capacity_bytes()
    if vmem_cap >= (100 << 20):          # v5e / v6e: 128 MiB per TensorCore
        target_bytes = 8 << 20
        vmem_limit = 96 << 20
    else:                                # v7x: 64 MiB per TensorCore
        target_bytes = 4 << 20
        vmem_limit = 40 << 20

    # Sublane packing: 8 rows for 32-bit, 16 for bf16, 32 for int8/fp8.
    sublane = max(8, 32 // max(int(itemsize), 1))

    rt = target_bytes // max(feat * itemsize, 1)
    rt = min(rt, 8192)                   # cap raised from 1024 -> 8192
    rt = (rt // sublane) * sublane
    rows_aligned = ((rows + sublane - 1) // sublane) * sublane
    rt = max(sublane, min(rt, rows_aligned))
    return rt, vmem_limit


def layer_normalization(x, alpha, bias, *, eps=1e-6, row_tile=None):
    orig_shape = x.shape
    feat = orig_shape[-1]
    assert feat > 1, "LayerNorm with unbiased std requires feat > 1"

    x2 = x.reshape(-1, feat)
    rows = x2.shape[0]
    itemsize = jnp.dtype(x.dtype).itemsize

    auto_tile, vmem_limit = _tiling_params(rows, feat, itemsize)
    if row_tile is None:
        row_tile = auto_tile

    # No host-side padding / slicing: Pallas handles the ragged final block
    # (rows are independent; OOB output writes are dropped).
    grid_rows = pl.cdiv(rows, row_tile)

    kernel = functools.partial(_layernorm_kernel, eps=eps, feat=feat)

    cost = pl.CostEstimate(
        flops=8 * rows * feat,
        transcendentals=2 * rows,
        bytes_accessed=2 * rows * feat * itemsize,
    )

    alpha = jnp.asarray(alpha, dtype=jnp.float32).reshape((1,))
    bias = jnp.asarray(bias, dtype=jnp.float32).reshape((1,))

    out = pl.pallas_call(
        kernel,
        out_shape=jax.ShapeDtypeStruct((rows, feat), x.dtype),
        grid_spec=pl.GridSpec(
            grid=(grid_rows,),
            in_specs=[
                # scalar parameters: whole (1,) arrays in SMEM, no tiling
                pl.BlockSpec(memory_space=pltpu.MemorySpace.SMEM),
                pl.BlockSpec(memory_space=pltpu.MemorySpace.SMEM),
                # row tile of the input; last dim == full feature dim
                pl.BlockSpec((row_tile, feat), lambda i: (i, 0)),
            ],
            out_specs=pl.BlockSpec((row_tile, feat), lambda i: (i, 0)),
        ),
        compiler_params=pltpu.CompilerParams(
            dimension_semantics=("parallel",),
            vmem_limit_bytes=vmem_limit,
        ),
        cost_estimate=cost,
    )(alpha, bias, x2)

    return out.reshape(orig_shape)


def _reference(x, alpha, bias, eps):
    xf = x.astype(jnp.float32)
    mean = xf.mean(axis=-1, keepdims=True)
    std = jnp.sqrt(
        ((xf - mean) ** 2).sum(axis=-1, keepdims=True) / (x.shape[-1] - 1))
    return (alpha[0] * (xf - mean) / (std + eps) + bias[0]).astype(x.dtype)


if __name__ == "__main__":
    key = jax.random.PRNGKey(0)
    k1, k2, k3 = jax.random.split(key, 3)

    # Deterministic parameter init matching nn.Parameter(torch.ones(1)).
    alpha = jnp.ones((1,), dtype=jnp.float32)
    bias = jnp.ones((1,), dtype=jnp.float32)
    eps = 1e-6

    # Main case: (batch=2, seq=8, hidden=128) — lane-dense feature width.
    x = jax.random.normal(k1, (2, 8, 128), dtype=jnp.float32)
    y = layer_normalization(x, alpha, bias, eps=eps)
    jax.block_until_ready(y)
    ref = _reference(x, alpha, bias, eps)
    assert jnp.allclose(y, ref, atol=1e-5, rtol=1e-5), \
        float(jnp.max(jnp.abs(y - ref)))

    # Narrow-feature + ragged row count (rows=15, not a multiple of 8):
    # exercises the Pallas ragged final block (no host-side pad/slice).
    x2 = jax.random.normal(k2, (3, 5, 32), dtype=jnp.float32)
    y2 = layer_normalization(x2, alpha, bias, eps=eps)
    jax.block_until_ready(y2)
    ref2 = _reference(x2, alpha, bias, eps)
    assert jnp.allclose(y2, ref2, atol=1e-5, rtol=1e-5), \
        float(jnp.max(jnp.abs(y2 - ref2)))

    # bf16 input: tile sizing uses itemsize=2, sublane packing 16.
    x3 = jax.random.normal(k3, (4, 256), dtype=jnp.bfloat16)
    y3 = layer_normalization(x3, alpha, bias, eps=eps)
    jax.block_until_ready(y3)
    ref3 = _reference(x3, alpha, bias, eps)
    assert jnp.allclose(y3.astype(jnp.float32), ref3.astype(jnp.float32),
                        atol=5e-2, rtol=5e-2), \
        float(jnp.max(jnp.abs(y3.astype(jnp.float32) -
                              ref3.astype(jnp.float32))))

    print("KERNEL_OK")
</pallas_src>

<mosaic_0001>
module attributes {stable_mosaic.version = 11 : i64} {
  func.func @_layernorm_kernel(%arg0: i32, %arg1: memref<1xf32, #tpu.memory_space<smem>>, %arg2: memref<1xf32, #tpu.memory_space<smem>>, %arg3: memref<16x128xf32, #tpu.memory_space<vmem>>, %arg4: memref<16x128xf32, #tpu.memory_space<vmem>>) attributes {dimension_semantics = [#tpu.dimension_semantics<parallel>], iteration_bounds = array<i64: 1>, scalar_prefetch = 0 : i64, scratch_operands = 0 : i64, tpu.core_type = #tpu.core_type<tc>, window_params = [{transform_indices = @transform_0, window_bounds = array<i64: 1>}, {transform_indices = @transform_1, window_bounds = array<i64: 1>}, {transform_indices = @transform_2, window_bounds = array<i64: 16, 128>}, {transform_indices = @transform_3, window_bounds = array<i64: 16, 128>}]} {
    %c0 = arith.constant 0 : index
    %c0_0 = arith.constant 0 : index
    %0 = vector.load %arg3[%c0, %c0_0] : memref<16x128xf32, #tpu.memory_space<vmem>>, vector<16x128xf32>
    %cst = arith.constant dense<0.000000e+00> : vector<16xf32>
    %1 = vector.multi_reduction <add>, %0, %cst [1] : vector<16x128xf32> to vector<16xf32>
    %2 = vector.shape_cast %1 : vector<16xf32> to vector<16x1xf32>
    %cst_1 = arith.constant 7.812500e-03 : f32
    %3 = vector.broadcast %cst_1 : f32 to vector<16x1xf32>
    %4 = arith.mulf %2, %3 : vector<16x1xf32>
    %5 = vector.broadcast %4 : vector<16x1xf32> to vector<16x128xf32>
    %6 = arith.subf %0, %5 : vector<16x128xf32>
    %7 = arith.mulf %6, %6 : vector<16x128xf32>
    %cst_2 = arith.constant dense<0.000000e+00> : vector<16xf32>
    %8 = vector.multi_reduction <add>, %7, %cst_2 [1] : vector<16x128xf32> to vector<16xf32>
    %9 = vector.shape_cast %8 : vector<16xf32> to vector<16x1xf32>
    %cst_3 = arith.constant 0.00787401571 : f32
    %10 = vector.broadcast %cst_3 : f32 to vector<16x1xf32>
    %11 = arith.mulf %9, %10 : vector<16x1xf32>
    %12 = math.sqrt %11 : vector<16x1xf32>
    %cst_4 = arith.constant 9.99999997E-7 : f32
    %13 = vector.broadcast %cst_4 : f32 to vector<16x1xf32>
    %14 = arith.addf %12, %13 : vector<16x1xf32>
    %15 = tpu.reciprocal %14 : vector<16x1xf32> -> vector<16x1xf32>
    %c0_5 = arith.constant 0 : index
    %16 = memref.load %arg1[%c0_5] : memref<1xf32, #tpu.memory_space<smem>>
    %17 = vector.broadcast %16 : f32 to vector<16x1xf32>
    %18 = arith.mulf %17, %15 : vector<16x1xf32>
    %19 = vector.broadcast %18 : vector<16x1xf32> to vector<16x128xf32>
    %20 = arith.mulf %6, %19 : vector<16x128xf32>
    %c0_6 = arith.constant 0 : index
    %21 = memref.load %arg2[%c0_6] : memref<1xf32, #tpu.memory_space<smem>>
    %22 = vector.broadcast %21 : f32 to vector<16x128xf32>
    %23 = arith.addf %20, %22 : vector<16x128xf32>
    %c0_7 = arith.constant 0 : index
    %c0_8 = arith.constant 0 : index
    %24 = vector.load %arg4[%c0_7, %c0_8] : memref<16x128xf32, #tpu.memory_space<vmem>>, vector<16x128xf32>
    tpu.vector_store %arg4[%c0_7, %c0_8], %23 {strides = array<i32>} : memref<16x128xf32, #tpu.memory_space<vmem>>, vector<16x128xf32>,
    return
  }
  func.func @transform_0(%arg0: i32) -> i32 {
    %c0_i32 = arith.constant 0 : i32
    %c0_i32_0 = arith.constant 0 : i32
    return %c0_i32 : i32
  }
  func.func @transform_1(%arg0: i32) -> i32 {
    %c0_i32 = arith.constant 0 : i32
    %c0_i32_0 = arith.constant 0 : i32
    return %c0_i32 : i32
  }
  func.func @transform_2(%arg0: i32) -> (i32, i32) {
    %c0_i32 = arith.constant 0 : i32
    %c0_i32_0 = arith.constant 0 : i32
    return %arg0, %c0_i32 : i32, i32
  }
  func.func @transform_3(%arg0: i32) -> (i32, i32) {
    %c0_i32 = arith.constant 0 : i32
    %c0_i32_0 = arith.constant 0 : i32
    return %arg0, %c0_i32 : i32, i32
  }
}

</mosaic_0001>

<llo_original>
// kernel: tpu_custom_call.1
$region0: #{tpu_custom_call.1}
  #allocation0 [shape = 'u32[]', space=smem, size = 0x4, offset = 0x4, fixed_abs, tag = 'smem constant byte address 0x4 - core index']
  #allocation1 [shape = 'u32[72,128]{1,0:T(1,128)}', space=vmem, size = 0x9000, scoped, tag = 'internal scratch']
  #allocation2 [shape = 'f32[1]{0:T(128)S(6)}', space=smem, size = 0x200, scoped, tag = 'scoped memory for tpu_custom_call.1']
  #allocation3 [shape = 'f32[1]{0:T(128)S(6)}', space=smem, size = 0x200, scoped, tag = 'scoped memory for tpu_custom_call.1']
  %s0 = inlined_call_operand.<no memory space> [shape: f32[1], index: 0, kind: input, shape index: {}]
  %s1 = inlined_call_operand.<no memory space> [shape: f32[1], index: 1, kind: input, shape index: {}]
  %s2 = inlined_call_operand.hbm [shape: f32[16,128], index: 2, kind: input, shape index: {}]
  %s3 = inlined_call_operand.hbm [shape: f32[16,128], index: 3, kind: output, shape index: {}]
  %s4 = sld [smem:[#allocation0]]
  $region26: #{tpu_custom_call.1} parent=0
    _
  %s6 = ssub.s32 1, %s4
  %s7 = scalar_select 0, %s6, %s4
  %8 = sst [smem:[#allocation2]] %s0
  %9 = sst [smem:[#allocation3]] %s1
  $region1: #{tpu_custom_call.1} parent=0
    #allocation4 [shape = 'u8[8192]{0}', space=vmem, size = 0x2000, scoped, tag = 'input window, operand 2, single buffered']
    #allocation5 [shape = 's32[1]{0}', space=sflag, size = 0x4, scoped, tag = 'scoped memory for tpu_custom_call.1']
    #allocation6 [shape = 's32[1]{0}', space=sflag, size = 0x4, scoped, tag = 'scoped memory for tpu_custom_call.1']
    #allocation7 [shape = 'u8[8192]{0}', space=vmem, size = 0x2000, scoped, tag = 'output window, operand 0, single buffered']
    %10 = vsyncpa [#allocation5], 0
    %11 = vsyncpa [#allocation6], 0
    // Predicated region
    $region2: #{tpu_custom_call.1} parent=1 // pred_check
      _
    $region3: #{tpu_custom_call.1} parent=1 // pred_check_branch
      %13 = sbr.rel (0) target = $region5
    $region4: #{tpu_custom_call.1} parent=1 // pred_region
      _
    $region5: #{tpu_custom_call.1} parent=1 // pred_fallthru
      _
    // Predicated region
    $region6: #{tpu_custom_call.1} parent=1 // pred_check
      _
    $region7: #{tpu_custom_call.1} parent=1 // pred_check_branch
      %15 = sbr.rel (0) target = $region9
    $region8: #{tpu_custom_call.1} parent=1 // pred_region
      _
    $region9: #{tpu_custom_call.1} parent=1 // pred_fallthru
      _
    // Predicated region
    $region10: #{tpu_custom_call.1} parent=1 // pred_check
      _
    $region11: #{tpu_custom_call.1} parent=1 // pred_check_branch
      %17 = sbr.rel (0) target = $region13
    $region12: #{tpu_custom_call.1} parent=1 // pred_region
      %19 = vsyncadd [#allocation5], 0
      %s20 = sshll.u32 %s2, 4
      %s21 = int_to_ptr.hbm [resolvable:$true] %s20
      %s22 = sshll.u32 [#allocation4], 4
      %s23 = int_to_ptr.vmem [resolvable:$true] %s22
      %28 = dma.hbm_to_vmem [thread:$0]  %s21, 256, %s23, [#allocation5], 128, 128, 8
    $region13: #{tpu_custom_call.1} parent=1 // pred_fallthru
      _
    // Predicated region
    $region14: #{tpu_custom_call.1} parent=1 // pred_check
      _
    $region15: #{tpu_custom_call.1} parent=1 // pred_check_branch
      %30 = sbr.rel (0) target = $region17
    $region16: #{tpu_custom_call.1} parent=1 // pred_region
      %32 = dma.done [#allocation5], 256
    $region17: #{tpu_custom_call.1} parent=1 // pred_fallthru
      _
    %v33 = vld [vmem:[#allocation4] sm:$0xff]
    %v34 = vld [vmem:[#allocation4 + $0x8] sm:$0xff]
    %35 = vadd.xlane.f32.xlu0 %v33
    %v36 = vpop.xlane.xlu0 %35
    %37 = vadd.xlane.f32.xlu0 %v34
    %v38 = vpop.xlane.xlu0 %37
    %v39 = vmul.f32 %v36, 0.0078125
    %v40 = vmul.f32 %v38, 0.0078125
    %v41 = vsub.f32 %v33, %v39
    %v42 = vsub.f32 %v34, %v40
    %v43 = vmul.f32 %v41, %v41
    %v44 = vmul.f32 %v42, %v42
    %45 = vadd.xlane.f32.xlu0 %v43
    %v46 = vpop.xlane.xlu0 %45
    %47 = vadd.xlane.f32.xlu0 %v44
    %v48 = vpop.xlane.xlu0 %47
    %v49 = vmul.f32 %v46, 0.007874016
    %v50 = vmul.f32 %v48, 0.007874016
    %v51 = vrsqrt.pop %v49
    %v52 = vmul.f32 %v51, %v49
    %v53 = vmul.f32 %v52, %v51
    %v54 = vmul.f32 0.5, %v53
    %v55 = vsub.f32 1.5, %v54
    %v56 = vmul.f32 %v51, %v55
    %v57 = vmul.f32 %v49, %v56
    %vm58 = vcmp.eq.f32.partialorder %v49, inf
    %v59 = vsel %vm58, %v49, %v57
    %vm60 = vcmp.eq.f32.partialorder %v49, 0.0
    %v61 = vand.u32 %v49, 2147483648
    %v62 = vsel %vm60, %v61, %v59
    %v63 = vrsqrt.pop %v50
    %v64 = vmul.f32 %v63, %v50
    %v65 = vmul.f32 %v64, %v63
    %v66 = vmul.f32 0.5, %v65
    %v67 = vsub.f32 1.5, %v66
    %v68 = vmul.f32 %v63, %v67
    %v69 = vmul.f32 %v50, %v68
    %vm70 = vcmp.eq.f32.partialorder %v50, inf
    %v71 = vsel %vm70, %v50, %v69
    %vm72 = vcmp.eq.f32.partialorder %v50, 0.0
    %v73 = vand.u32 %v50, 2147483648
    %v74 = vsel %vm72, %v73, %v71
    %v75 = vadd.f32 %v62, 1e-06
    %v76 = vadd.f32 %v74, 1e-06
    %v77 = vrcp.pop %v75
    %v78 = vmul.f32 %v75, %v77
    %v79 = vsub.f32 1.0, %v78
    %v80 = vmul.f32 %v77, %v79
    %v81 = vadd.f32 %v77, %v80
    %vm82 = vweird.f32 %v75
    %vm83 = vweird.f32 %v77
    %vm84 = vmor %vm82, %vm83
    %v85 = vsel %vm84, %v77, %v81
    %v86 = vand.u32 2147483647, %v75
    %vm87 = vcmp.eq.f32.partialorder %v86, 8.507059e+37
    %v88 = vand.u32 %v75, 2147483648
    %v89 = vor.u32 1.1754944e-38, %v88
    %v90 = vsel %vm87, %v89, %v85
    %v91 = vrcp.pop %v76
    %v92 = vmul.f32 %v76, %v91
    %v93 = vsub.f32 1.0, %v92
    %v94 = vmul.f32 %v91, %v93
    %v95 = vadd.f32 %v91, %v94
    %vm96 = vweird.f32 %v76
    %vm97 = vweird.f32 %v91
    %vm98 = vmor %vm96, %vm97
    %v99 = vsel %vm98, %v91, %v95
    %v100 = vand.u32 2147483647, %v76
    %vm101 = vcmp.eq.f32.partialorder %v100, 8.507059e+37
    %v102 = vand.u32 %v76, 2147483648
    %v103 = vor.u32 1.1754944e-38, %v102
    %v104 = vsel %vm101, %v103, %v99
    %s105 = sld [smem:[#allocation2]]
    %v106 = vstv %s105
    %v107 = vmul.f32 %v106, %v90
    %v108 = vmul.f32 %v106, %v104
    %v109 = vmul.f32 %v41, %v107
    %v110 = vmul.f32 %v42, %v108
    %s111 = sld [smem:[#allocation3]]
    %v112 = vstv %s111
    %v113 = vadd.f32 %v109, %v112
    %v114 = vadd.f32 %v110, %v112
    %115 = vst [vmem:[#allocation7] sm:$0xff] %v113
    %116 = vst [vmem:[#allocation7 + $0x8] sm:$0xff] %v114
    // Predicated region
    $region18: #{tpu_custom_call.1} parent=1 // pred_check
      _
    $region19: #{tpu_custom_call.1} parent=1 // pred_check_branch
      %118 = sbr.rel (0) target = $region21
    $region20: #{tpu_custom_call.1} parent=1 // pred_region
      %120 = vsyncadd [#allocation6], 0
      %s121 = sshll.u32 [#allocation7], 4
      %s122 = int_to_ptr.vmem [resolvable:$true] %s121
      %s123 = sshll.u32 %s3, 4
      %s124 = int_to_ptr.hbm [resolvable:$true] %s123
      %129 = dma.vmem_to_hbm [thread:$0]  %s122, 256, %s124, [#allocation6], 128, 128, 8
    $region21: #{tpu_custom_call.1} parent=1 // pred_fallthru
      _
    // Predicated region
    $region22: #{tpu_custom_call.1} parent=1 // pred_check
      _
    $region23: #{tpu_custom_call.1} parent=1 // pred_check_branch
      %131 = sbr.rel (0) target = $region25
    $region24: #{tpu_custom_call.1} parent=1 // pred_region
      %133 = dma.done [#allocation6], 256
    $region25: #{tpu_custom_call.1} parent=1 // pred_fallthru
      _
    %134 = vsyncpa [#allocation5], 1
    %135 = vsyncpa [#allocation6], 1

</llo_original>
